<compile_context>
chip_gen: v7x
topology: tpu7x:2x2x1
jax: 0.10.0
libtpu: 0.0.40
codegen_flags: <defaults>
</compile_context>

<pallas_src>
import functools

import jax
import jax.numpy as jnp
from jax import lax
from jax.experimental import pallas as pl
from jax.experimental.pallas import tpu as pltpu


def _round_up(x, m):
    return ((x + m - 1) // m) * m


# -----------------------------------------------------------------------------
# Pallas kernel: matched-pair CE + L1 losses for one (batch, layer) grid step.
# -----------------------------------------------------------------------------
def _dn_loss_kernel(pred_ref, gt_ref, idx_ref, out_ref, *, M, C, B_total):
    pred = pred_ref[0]                          # (1, Q, C+D)  bf16 fused block
    gt = gt_ref[...]                            # (1, M, D)    f32 gathered tpos
    idx = idx_ref[...]                          # (1, 8, Npad) i32 packed indices

    Q = pred.shape[1]

    pidx = idx[:, 0, :M]                        # (1, M) matched pred indices
    glab = idx[:, 1, :M]                        # (1, M) gathered target labels

    # ---- single fused gather matmul on the MXU ------------------------------
    # one-hot is exact in bf16; f32 accumulation -> [g_logits | g_pos] in f32.
    q_iota = lax.broadcasted_iota(jnp.int32, (1, M, Q), 2)
    onehot = (pidx[:, :, None] == q_iota).astype(jnp.bfloat16)          # (1,M,Q)
    gathered = jnp.einsum("bmq,bqc->bmc", onehot, pred,
                          preferred_element_type=jnp.float32)           # (1,M,C+D)

    # NOTE: at production sizes pad C to a lane multiple (128/256) wrapper-side
    # so these lane slices do not force a relayout.
    g_logits = gathered[:, :, :C]                                       # (1,M,C)
    diff = gathered[:, :, C:] - gt                                      # (1,M,D)

    # ---- softmax cross-entropy + L1, all in f32 ------------------------------
    row_max = jnp.max(g_logits, axis=-1, keepdims=True)
    lse = jnp.log(jnp.sum(jnp.exp(g_logits - row_max), axis=-1,
                          keepdims=True)) + row_max                     # (1,M,1)
    c_iota = lax.broadcasted_iota(jnp.int32, (1, M, C), 2)
    tgt_logit = jnp.sum(jnp.where(glab[:, :, None] == c_iota, g_logits, 0.0),
                        axis=-1, keepdims=True)                         # (1,M,1)

    inv = 1.0 / float(B_total * M)              # global norm; partial sums over
    ce = jnp.sum(lse - tgt_logit) * inv         # the batch axis are added outside
    l1 = jnp.sum(jnp.abs(diff)) * inv

    # full (8,128) lane-dense tile store: lane 0 = loss_ce, lane 1 = loss_position
    lanes = lax.broadcasted_iota(jnp.int32, (1, 1, 8, 128), 3)
    out_ref[...] = jnp.where(lanes == 0, ce, jnp.where(lanes == 1, l1, 0.0))


# -----------------------------------------------------------------------------
# Wrapper: fused multi-layer losses
# -----------------------------------------------------------------------------
def _matched_losses_fused(fused_preds, num_classes, tgt_labels, tgt_positions,
                          pred_idx, tgt_idx):
    """fused_preds: (L, B, Q, C+D) bf16 = [pred_logits | pred_positions].

    Returns (L, 2) f32: [:, 0] = loss_ce, [:, 1] = loss_position.
    """
    L, B, Q, CD = fused_preds.shape
    C = num_classes
    D = CD - C
    M = pred_idx.shape[-1]
    Npad = max(128, _round_up(M, 128))          # lane-dense index rows

    tgt_idx = tgt_idx.astype(jnp.int32)
    pred_idx = pred_idx.astype(jnp.int32)

    # Layer-invariant target-side gathers: computed once (tiny), shared by all
    # layers -- removes the per-layer tpos matmul / label masked-sum entirely.
    g_tpos = jnp.take_along_axis(
        tgt_positions.astype(jnp.float32), tgt_idx[..., None], axis=1)   # (B,M,D)
    g_label = jnp.take_along_axis(tgt_labels.astype(jnp.int32), tgt_idx,
                                  axis=1)                                # (B,M)

    # pack the two tiny index tensors into one lane-dense i32 block (one DMA)
    packed = jnp.zeros((B, 8, Npad), jnp.int32)
    packed = packed.at[:, 0, :M].set(pred_idx)
    packed = packed.at[:, 1, :M].set(g_label)

    kernel = functools.partial(_dn_loss_kernel, M=M, C=C, B_total=B)

    out = pl.pallas_call(
        kernel,
        out_shape=jax.ShapeDtypeStruct((L, B, 8, 128), jnp.float32),
        grid_spec=pltpu.PrefetchScalarGridSpec(
            num_scalar_prefetch=0,
            # B outer / L inner: the per-batch target blocks keep a constant
            # block index across the inner L loop (no re-fetch).
            grid=(B, L),
            in_specs=[
                pl.BlockSpec((1, 1, Q, CD), lambda b, l: (l, b, 0, 0)),
                pl.BlockSpec((1, M, D), lambda b, l: (b, 0, 0)),
                pl.BlockSpec((1, 8, Npad), lambda b, l: (b, 0, 0)),
            ],
            out_specs=pl.BlockSpec((1, 1, 8, 128), lambda b, l: (l, b, 0, 0)),
        ),
        # Both axes are embarrassingly parallel -> v7x can shard (b, l) steps
        # across its two TensorCores; serial (free) loop on v5e/v6e.
        # Per-step VMEM is tiny here; at production Q/C raise vmem_limit_bytes
        # in CompilerParams and keep the double-buffered (Q, C+D) bf16 block
        # under the 16 MiB (v5e) / 32 MiB (v6e, v7x) scoped-VMEM defaults.
        compiler_params=pltpu.CompilerParams(
            dimension_semantics=("parallel", "parallel")),
    )(fused_preds, g_tpos, packed)

    # per-(l, b) partial sums (already normalized by 1/(B*M)) -> per-layer losses
    return out[:, :, 0, :2].sum(axis=1)                                  # (L, 2)


def _stack_fused_predictions(layer_outputs):
    """Stack per-layer dicts into one (L, B, Q, C+D) bf16 block.

    The bf16 cast and the position concat are fused into the stack copy that a
    multi-layer launch has to pay anyway.  If the decoder already emits stacked
    (L, B, Q, C)/(L, B, Q, D) tensors, call compute_matched_losses directly and
    skip this extra HBM round-trip.
    """
    return jnp.stack(
        [jnp.concatenate([o["pred_logits"].astype(jnp.bfloat16),
                          o["pred_positions"].astype(jnp.bfloat16)], axis=-1)
         for o in layer_outputs], axis=0)


def compute_matched_losses(pred_logits, pred_positions, tgt_labels,
                           tgt_positions, pred_idx, tgt_idx):
    """Pallas-backed matched-pair losses for a stack of decoder layers.

    pred_logits: (L, B, Q, C); pred_positions: (L, B, Q, D);
    tgt_labels: (B, Nt) int; tgt_positions: (B, Nt, D);
    pred_idx / tgt_idx: (B, M) matched indices (shared across layers).
    Returns (L, 2) f32: [:, 0] = loss_ce, [:, 1] = loss_position.
    """
    fused = jnp.concatenate([pred_logits.astype(jnp.bfloat16),
                             pred_positions.astype(jnp.bfloat16)], axis=-1)
    return _matched_losses_fused(fused, pred_logits.shape[-1], tgt_labels,
                                 tgt_positions, pred_idx, tgt_idx)


def loss_calculator(output, target_dict, matched_indices):
    """Single-output LossCalculator API (L=1 launch of the fused kernel)."""
    pred_idx, tgt_idx = matched_indices
    fused = _stack_fused_predictions([output])
    per_layer = _matched_losses_fused(
        fused, output["pred_logits"].shape[-1], target_dict["labels"],
        target_dict["positions"], pred_idx, tgt_idx)
    losses = {"loss_ce": per_layer[0, 0], "loss_position": per_layer[0, 1]}
    extras = {"matched_indices": matched_indices}
    return losses, extras


# -----------------------------------------------------------------------------
# Handlers (dict/string plumbing stays in Python, mirroring the PyTorch forward)
# -----------------------------------------------------------------------------
class AuxLossHandlerJax:
    def __init__(self, n_aux_losses, aux_loss_weight, use_final_matches=True):
        self.n_aux_losses = n_aux_losses
        self.use_final_matches = use_final_matches
        self.aux_loss_weight = jnp.asarray(aux_loss_weight, jnp.float32)

    def __call__(self, aux_outputs, target_dict, loss_calculator, matcher=None,
                 final_matched_indices=None):
        assert len(aux_outputs) == self.n_aux_losses
        aux_loss_dict = {}
        matched_indices_dict = {}
        if final_matched_indices is not None:
            # All aux layers share the same matched indices -> fuse every layer
            # into ONE pallas_call ((B, L) parallel grid).
            pred_idx, tgt_idx = final_matched_indices
            fused = _stack_fused_predictions(aux_outputs)
            per_layer = _matched_losses_fused(
                fused, aux_outputs[0]["pred_logits"].shape[-1],
                target_dict["labels"], target_dict["positions"],
                pred_idx, tgt_idx)
            for idx in range(len(aux_outputs)):
                aux_loss_dict[f"aux_losses/{idx}/loss_ce"] = per_layer[idx, 0]
                aux_loss_dict[f"aux_losses/{idx}/loss_position"] = per_layer[idx, 1]
                matched_indices_dict[f"{idx}"] = final_matched_indices
        else:
            # TODO(synk): HungarianMatcher is an external dependency with no
            # Pallas equivalent here; per-layer matcher path falls back to one
            # loss_calculator call per layer.
            assert matcher is not None
            for idx, output_i in enumerate(aux_outputs):
                matched_indices_i = matcher(output_i, target_dict)
                losses_i, _ = loss_calculator(output_i, target_dict,
                                              matched_indices_i)
                for k, v in losses_i.items():
                    aux_loss_dict[f"aux_losses/{idx}/{k}"] = v
                matched_indices_dict[f"{idx}"] = matched_indices_i
        return aux_loss_dict, matched_indices_dict

    def apply_loss_weights(self, loss_dict):
        # A handful of scalar multiplies: plain jnp, XLA fuses (no Pallas launch).
        return {k: (v * self.aux_loss_weight if "aux_loss" in k else v)
                for k, v in loss_dict.items()}


class DenoisingHandlerJax:
    def __init__(self, denoising_loss_weight):
        self.denoising_loss_weight = jnp.asarray(denoising_loss_weight, jnp.float32)

    def __call__(self, denoising_output, target_dict, loss_calculator,
                 aux_loss_handler=None):
        matched = denoising_output["denoising_matched_indices"]
        if "aux_outputs" in denoising_output:
            assert aux_loss_handler is not None
            # Fused fast path: the main output and every aux layer reuse the same
            # matched indices (the final_matched_indices path of AuxLossHandler),
            # so ALL layers go through a single pallas_call.  Produces exactly
            # the same loss dict as the original delegate-per-layer structure.
            layers = [denoising_output] + list(denoising_output["aux_outputs"])
            fused = _stack_fused_predictions(layers)
            per_layer = _matched_losses_fused(
                fused, denoising_output["pred_logits"].shape[-1],
                target_dict["labels"], target_dict["positions"],
                matched[0], matched[1])
            denoising_losses = {"loss_ce": per_layer[0, 0],
                                "loss_position": per_layer[0, 1]}
            for i in range(len(layers) - 1):
                denoising_losses[f"aux_losses/{i}/loss_ce"] = per_layer[i + 1, 0]
                denoising_losses[f"aux_losses/{i}/loss_position"] = per_layer[i + 1, 1]
        else:
            denoising_losses, _ = loss_calculator(denoising_output, target_dict,
                                                  matched)
        denoising_extras_dict = {"matched_indices": matched}
        denoising_losses = {f"dn/{k}": v for k, v in denoising_losses.items()}
        return denoising_losses, denoising_extras_dict

    def apply_loss_weights(self, loss_dict):
        return {k: (v * self.denoising_loss_weight if k.startswith("dn/") else v)
                for k, v in loss_dict.items()}


# -----------------------------------------------------------------------------
# pure-JAX reference (mirrors the kernel's bf16 rounding of the prediction
# stream; target positions stay f32 as in the kernel)
# -----------------------------------------------------------------------------
def _ref_losses(logits, pos, labels, tpos, pidx, tidx):
    logits = logits.astype(jnp.bfloat16).astype(jnp.float32)
    pos = pos.astype(jnp.bfloat16).astype(jnp.float32)
    tpos = tpos.astype(jnp.float32)
    B = logits.shape[0]
    M = pidx.shape[1]
    gl = jnp.take_along_axis(logits, pidx[..., None], axis=1)           # (B,M,C)
    gp = jnp.take_along_axis(pos, pidx[..., None], axis=1)              # (B,M,D)
    gt = jnp.take_along_axis(tpos, tidx[..., None], axis=1)             # (B,M,D)
    glab = jnp.take_along_axis(labels, tidx, axis=1)                    # (B,M)
    lse = jax.nn.logsumexp(gl, axis=-1)
    tgt_logit = jnp.take_along_axis(gl, glab[..., None], axis=-1)[..., 0]
    ce = jnp.sum(lse - tgt_logit) / (B * M)
    l1 = jnp.sum(jnp.abs(gp - gt)) / (B * M)
    return ce, l1


if __name__ == "__main__":
    B, Q, C, D, Nt, M = 2, 8, 8, 2, 8, 8
    n_aux = 2
    key = jax.random.PRNGKey(0)
    ks = jax.random.split(key, 8)

    pred_logits = jax.random.normal(ks[0], (B, Q, C), jnp.float32)
    pred_pos = jax.random.normal(ks[1], (B, Q, D), jnp.float32)
    tgt_labels = jax.random.randint(ks[2], (B, Nt), 0, C).astype(jnp.int32)
    tgt_pos = jax.random.normal(ks[3], (B, Nt, D), jnp.float32)
    pred_idx = jnp.stack([jax.random.permutation(jax.random.fold_in(ks[4], b), Q)[:M]
                          for b in range(B)]).astype(jnp.int32)
    tgt_idx = jnp.stack([jax.random.permutation(jax.random.fold_in(ks[5], b), Nt)[:M]
                         for b in range(B)]).astype(jnp.int32)

    aux_outputs = []
    for i in range(n_aux):
        aux_outputs.append({
            "pred_logits": jax.random.normal(jax.random.fold_in(key, 100 + i),
                                             (B, Q, C), jnp.float32),
            "pred_positions": jax.random.normal(jax.random.fold_in(key, 200 + i),
                                                (B, Q, D), jnp.float32),
        })

    denoising_output = {
        "pred_logits": pred_logits,
        "pred_positions": pred_pos,
        "denoising_matched_indices": (pred_idx, tgt_idx),
        "aux_outputs": aux_outputs,
    }
    target_dict = {"labels": tgt_labels, "positions": tgt_pos}

    aux_handler = AuxLossHandlerJax(n_aux_losses=n_aux, aux_loss_weight=0.5)
    dn_handler = DenoisingHandlerJax(denoising_loss_weight=0.25)

    dn_losses, extras = dn_handler(denoising_output, target_dict, loss_calculator,
                                   aux_loss_handler=aux_handler)
    weighted = dn_handler.apply_loss_weights(dn_losses)
    jax.block_until_ready(weighted)

    # correctness: main + each aux layer against the pure-JAX reference
    ref_ce, ref_l1 = _ref_losses(pred_logits, pred_pos, tgt_labels, tgt_pos,
                                 pred_idx, tgt_idx)
    assert jnp.allclose(dn_losses["dn/loss_ce"], ref_ce, rtol=1e-4, atol=1e-5)
    assert jnp.allclose(dn_losses["dn/loss_position"], ref_l1, rtol=1e-4, atol=1e-5)
    for i in range(n_aux):
        rce, rl1 = _ref_losses(aux_outputs[i]["pred_logits"],
                               aux_outputs[i]["pred_positions"],
                               tgt_labels, tgt_pos, pred_idx, tgt_idx)
        assert jnp.allclose(dn_losses[f"dn/aux_losses/{i}/loss_ce"], rce,
                            rtol=1e-4, atol=1e-5)
        assert jnp.allclose(dn_losses[f"dn/aux_losses/{i}/loss_position"], rl1,
                            rtol=1e-4, atol=1e-5)

    # loss weighting (plain jnp) matches the PyTorch semantics
    assert jnp.allclose(weighted["dn/loss_ce"], dn_losses["dn/loss_ce"] * 0.25,
                        rtol=1e-6, atol=1e-7)
    assert jnp.allclose(weighted["dn/aux_losses/0/loss_ce"],
                        dn_losses["dn/aux_losses/0/loss_ce"] * 0.25,
                        rtol=1e-6, atol=1e-7)

    expected_keys = {"dn/loss_ce", "dn/loss_position"} | {
        f"dn/aux_losses/{i}/{k}" for i in range(n_aux)
        for k in ("loss_ce", "loss_position")}
    assert set(dn_losses.keys()) == expected_keys

    # standalone AuxLossHandler path (fused aux-only launch) agrees
    aux_only, _ = aux_handler(aux_outputs, target_dict, loss_calculator,
                              final_matched_indices=(pred_idx, tgt_idx))
    assert jnp.allclose(aux_only["aux_losses/0/loss_ce"],
                        dn_losses["dn/aux_losses/0/loss_ce"], rtol=1e-5, atol=1e-6)

    # single-layer loss_calculator path (L=1 grid) also works
    single_losses, _ = loss_calculator(
        {"pred_logits": pred_logits, "pred_positions": pred_pos},
        target_dict, (pred_idx, tgt_idx))
    assert jnp.allclose(single_losses["loss_ce"], ref_ce, rtol=1e-4, atol=1e-5)

    print("KERNEL_OK")
</pallas_src>

<mosaic_0001>
module attributes {stable_mosaic.version = 11 : i64} {
  func.func @_dn_loss_kernel(%arg0: i32, %arg1: i32, %arg2: memref<1x1x8x10xbf16, #tpu.memory_space<vmem>>, %arg3: memref<1x8x2xf32, #tpu.memory_space<vmem>>, %arg4: memref<1x8x128xi32, #tpu.memory_space<vmem>>, %arg5: memref<1x1x8x128xf32, #tpu.memory_space<vmem>>) attributes {dimension_semantics = [#tpu.dimension_semantics<parallel>, #tpu.dimension_semantics<parallel>], iteration_bounds = array<i64: 2, 3>, scalar_prefetch = 0 : i64, scratch_operands = 0 : i64, tpu.core_type = #tpu.core_type<tc>, window_params = [{transform_indices = @transform_0, window_bounds = array<i64: 1, 1, 8, 10>}, {transform_indices = @transform_1, window_bounds = array<i64: 1, 8, 2>}, {transform_indices = @transform_2, window_bounds = array<i64: 1, 8, 128>}, {transform_indices = @transform_3, window_bounds = array<i64: 1, 1, 8, 128>}]} {
    %c0 = arith.constant 0 : index
    %c0_0 = arith.constant 0 : index
    %c0_1 = arith.constant 0 : index
    %c0_2 = arith.constant 0 : index
    %0 = vector.load %arg2[%c0, %c0_0, %c0_1, %c0_2] : memref<1x1x8x10xbf16, #tpu.memory_space<vmem>>, vector<1x1x8x10xbf16>
    %1 = vector.shape_cast %0 : vector<1x1x8x10xbf16> to vector<1x8x10xbf16>
    %c0_3 = arith.constant 0 : index
    %c0_4 = arith.constant 0 : index
    %c0_5 = arith.constant 0 : index
    %2 = vector.load %arg3[%c0_3, %c0_4, %c0_5] : memref<1x8x2xf32, #tpu.memory_space<vmem>>, vector<1x8x2xf32>
    %c0_6 = arith.constant 0 : index
    %c0_7 = arith.constant 0 : index
    %c0_8 = arith.constant 0 : index
    %3 = vector.load %arg4[%c0_6, %c0_7, %c0_8] : memref<1x8x128xi32, #tpu.memory_space<vmem>>, vector<1x8x128xi32>
    %4 = vector.extract_strided_slice %3 {offsets = [0, 0, 0], sizes = [1, 1, 8], strides = [1, 1, 1]} : vector<1x8x128xi32> to vector<1x1x8xi32>
    %5 = vector.shape_cast %4 : vector<1x1x8xi32> to vector<1x8xi32>
    %6 = vector.extract_strided_slice %3 {offsets = [0, 1, 0], sizes = [1, 1, 8], strides = [1, 1, 1]} : vector<1x8x128xi32> to vector<1x1x8xi32>
    %7 = vector.shape_cast %6 : vector<1x1x8xi32> to vector<1x8xi32>
    %8 = tpu.iota {dimensions = array<i32: 2>} : vector<1x8x8xi32>
    %9 = vector.shape_cast %5 : vector<1x8xi32> to vector<1x8x1xi32>
    %10 = vector.broadcast %9 : vector<1x8x1xi32> to vector<1x8x8xi32>
    %11 = arith.cmpi eq, %10, %8 : vector<1x8x8xi32>
    %12 = arith.extui %11 : vector<1x8x8xi1> to vector<1x8x8xi32>
    %13 = arith.sitofp %12 : vector<1x8x8xi32> to vector<1x8x8xf32>
    %14 = arith.truncf %13 : vector<1x8x8xf32> to vector<1x8x8xbf16>
    "tpu.trace_start"() <{level = 10 : i32, message = "bmq,bqc->bmc"}> : () -> ()
    %cst = arith.constant dense<0.000000e+00> : vector<1x8x10xf32>
    %15 = tpu.matmul %14, %1, %cst {dimension_numbers = #tpu.dot_dimension_numbers<[2], [1], [1], [2], [0, 0, 0, 1, 1, 2], [0], [0]>} : vector<1x8x8xbf16>, vector<1x8x10xbf16>, vector<1x8x10xf32> -> vector<1x8x10xf32>
    "tpu.trace_stop"() : () -> ()
    %16 = vector.extract_strided_slice %15 {offsets = [0, 0, 0], sizes = [1, 8, 8], strides = [1, 1, 1]} : vector<1x8x10xf32> to vector<1x8x8xf32>
    %17 = vector.extract_strided_slice %15 {offsets = [0, 0, 8], sizes = [1, 8, 2], strides = [1, 1, 1]} : vector<1x8x10xf32> to vector<1x8x2xf32>
    %18 = arith.subf %17, %2 : vector<1x8x2xf32>
    %cst_9 = arith.constant dense<0xFF800000> : vector<1x8xf32>
    %19 = vector.multi_reduction <maximumf>, %16, %cst_9 [2] : vector<1x8x8xf32> to vector<1x8xf32>
    %20 = vector.shape_cast %19 : vector<1x8xf32> to vector<1x8x1xf32>
    %21 = vector.broadcast %20 : vector<1x8x1xf32> to vector<1x8x8xf32>
    %22 = arith.subf %16, %21 : vector<1x8x8xf32>
    %23 = math.exp %22 : vector<1x8x8xf32>
    %cst_10 = arith.constant dense<0.000000e+00> : vector<1x8xf32>
    %24 = vector.multi_reduction <add>, %23, %cst_10 [2] : vector<1x8x8xf32> to vector<1x8xf32>
    %25 = vector.shape_cast %24 : vector<1x8xf32> to vector<1x8x1xf32>
    %26 = math.log %25 : vector<1x8x1xf32>
    %27 = arith.addf %26, %20 : vector<1x8x1xf32>
    %28 = tpu.iota {dimensions = array<i32: 2>} : vector<1x8x8xi32>
    %29 = vector.shape_cast %7 : vector<1x8xi32> to vector<1x8x1xi32>
    %30 = vector.broadcast %29 : vector<1x8x1xi32> to vector<1x8x8xi32>
    %31 = arith.cmpi eq, %30, %28 : vector<1x8x8xi32>
    %cst_11 = arith.constant 0.000000e+00 : f32
    %32 = vector.broadcast %cst_11 : f32 to vector<1x8x8xf32>
    %33 = arith.select %31, %16, %32 : vector<1x8x8xi1>, vector<1x8x8xf32>
    %cst_12 = arith.constant dense<0.000000e+00> : vector<1x8xf32>
    %34 = vector.multi_reduction <add>, %33, %cst_12 [2] : vector<1x8x8xf32> to vector<1x8xf32>
    %35 = vector.shape_cast %34 : vector<1x8xf32> to vector<1x8x1xf32>
    %36 = arith.subf %27, %35 : vector<1x8x1xf32>
    %37 = vector.shape_cast %36 : vector<1x8x1xf32> to vector<1x1x8x1xf32>
    %cst_13 = arith.constant dense<0.000000e+00> : vector<1xf32>
    %38 = vector.multi_reduction <add>, %37, %cst_13 [1, 2, 3] : vector<1x1x8x1xf32> to vector<1xf32>
    %39 = vector.shape_cast %38 : vector<1xf32> to vector<1x1x1x1xf32>
    %40 = vector.extract %39[0, 0, 0, 0] : f32 from vector<1x1x1x1xf32>
    %cst_14 = arith.constant 6.250000e-02 : f32
    %41 = arith.mulf %40, %cst_14 : f32
    %42 = math.absf %18 : vector<1x8x2xf32>
    %43 = vector.shape_cast %42 : vector<1x8x2xf32> to vector<1x1x8x2xf32>
    %cst_15 = arith.constant dense<0.000000e+00> : vector<1xf32>
    %44 = vector.multi_reduction <add>, %43, %cst_15 [1, 2, 3] : vector<1x1x8x2xf32> to vector<1xf32>
    %45 = vector.shape_cast %44 : vector<1xf32> to vector<1x1x1x1xf32>
    %46 = vector.extract %45[0, 0, 0, 0] : f32 from vector<1x1x1x1xf32>
    %cst_16 = arith.constant 6.250000e-02 : f32
    %47 = arith.mulf %46, %cst_16 : f32
    %48 = tpu.iota {dimensions = array<i32: 3>} : vector<1x1x8x128xi32>
    %c0_i32 = arith.constant 0 : i32
    %49 = vector.broadcast %c0_i32 : i32 to vector<1x1x8x128xi32>
    %50 = arith.cmpi eq, %48, %49 : vector<1x1x8x128xi32>
    %c1_i32 = arith.constant 1 : i32
    %51 = vector.broadcast %c1_i32 : i32 to vector<1x1x8x128xi32>
    %52 = arith.cmpi eq, %48, %51 : vector<1x1x8x128xi32>
    %cst_17 = arith.constant 0.000000e+00 : f32
    %53 = vector.broadcast %47 : f32 to vector<1x1x8x128xf32>
    %54 = vector.broadcast %cst_17 : f32 to vector<1x1x8x128xf32>
    %55 = arith.select %52, %53, %54 : vector<1x1x8x128xi1>, vector<1x1x8x128xf32>
    %56 = vector.broadcast %41 : f32 to vector<1x1x8x128xf32>
    %57 = arith.select %50, %56, %55 : vector<1x1x8x128xi1>, vector<1x1x8x128xf32>
    %c0_18 = arith.constant 0 : index
    %c0_19 = arith.constant 0 : index
    %c0_20 = arith.constant 0 : index
    %c0_21 = arith.constant 0 : index
    %58 = vector.load %arg5[%c0_18, %c0_19, %c0_20, %c0_21] : memref<1x1x8x128xf32, #tpu.memory_space<vmem>>, vector<1x1x8x128xf32>
    tpu.vector_store %arg5[%c0_18, %c0_19, %c0_20, %c0_21], %57 {strides = array<i32>} : memref<1x1x8x128xf32, #tpu.memory_space<vmem>>, vector<1x1x8x128xf32>,
    return
  }
  func.func @transform_0(%arg0: i32, %arg1: i32) -> (i32, i32, i32, i32) {
    %c0_i32 = arith.constant 0 : i32
    %c0_i32_0 = arith.constant 0 : i32
    %c0_i32_1 = arith.constant 0 : i32
    return %arg1, %arg0, %c0_i32, %c0_i32_0 : i32, i32, i32, i32
  }
  func.func @transform_1(%arg0: i32, %arg1: i32) -> (i32, i32, i32) {
    %c0_i32 = arith.constant 0 : i32
    %c0_i32_0 = arith.constant 0 : i32
    %c0_i32_1 = arith.constant 0 : i32
    return %arg0, %c0_i32, %c0_i32_0 : i32, i32, i32
  }
  func.func @transform_2(%arg0: i32, %arg1: i32) -> (i32, i32, i32) {
    %c0_i32 = arith.constant 0 : i32
    %c0_i32_0 = arith.constant 0 : i32
    %c0_i32_1 = arith.constant 0 : i32
    return %arg0, %c0_i32, %c0_i32_0 : i32, i32, i32
  }
  func.func @transform_3(%arg0: i32, %arg1: i32) -> (i32, i32, i32, i32) {
    %c0_i32 = arith.constant 0 : i32
    %c0_i32_0 = arith.constant 0 : i32
    %c0_i32_1 = arith.constant 0 : i32
    return %arg1, %arg0, %c0_i32, %c0_i32_0 : i32, i32, i32, i32
  }
}

</mosaic_0001>

<llo_original>
// kernel: tpu_custom_call.1
$region0: #{tpu_custom_call.1}
  #allocation0 [shape = 'u32[]', space=smem, size = 0x4, offset = 0x4, fixed_abs, tag = 'smem constant byte address 0x4 - core index']
  #allocation1 [shape = 'u32[144,128]{1,0:T(1,128)}', space=vmem, size = 0x12000, scoped, tag = 'internal scratch']
  %s0 = inlined_call_operand.hbm [shape: bf16[3,2,8,10], index: 0, kind: input, shape index: {}]
  %s1 = inlined_call_operand.vmem [shape: f32[2,8,2], index: 1, kind: input, shape index: {}]
  %s2 = inlined_call_operand.vmem [shape: s32[2,8,128], index: 2, kind: input, shape index: {}]
  %s3 = inlined_call_operand.hbm [shape: f32[3,2,8,128], index: 3, kind: output, shape index: {}]
  %s4 = sld [smem:[#allocation0]]
  $region49: #{tpu_custom_call.1} parent=0
    _
  %s6 = ssub.s32 1, %s4
  %s7 = scalar_select 0, %s6, %s4
  $region1: #{tpu_custom_call.1} parent=0
    #allocation2 [shape = 'u8[4096]{0}', space=vmem, size = 0x1000, scoped, tag = 'input window, operand 0']
    #allocation3 [shape = 's32[2]{0}', space=sflag, size = 0x8, scoped, tag = 'scoped memory for tpu_custom_call.1']
    #allocation4 [shape = 's32[2]{0}', space=sflag, size = 0x8, scoped, tag = 'scoped memory for tpu_custom_call.1']
    #allocation5 [shape = 'u8[8192]{0}', space=vmem, size = 0x2000, scoped, tag = 'output window, operand 0']
    %8 = vsyncpa [#allocation3], 0
    %s9 = scalar_lea.sflag [#allocation3], 1
    %10 = vsyncpa %s9, 0
    %11 = vsyncpa [#allocation4], 0
    %s12 = scalar_lea.sflag [#allocation4], 1
    %13 = vsyncpa %s12, 0
    loop: start=0, step=1, limit=8
    $region2: #{tpu_custom_call.1} parent=1 // loop_pre_header
      _
    $region3: #{tpu_custom_call.1} parent=1 // loop_header
      %s15 = sphi 0, %s19
      %p16 = scmp.ge.s32.totalorder %s15, 8
      %s22 = sphi 0, %s34
      %s23 = sphi 0, %s30
      %s24 = sphi 0, %s22
      %s25 = sphi 0, %s23
      %s26 = sphi 0, %s24
      %s27 = sphi 0, %s25
      %s39 = sphi 0, %s41
      %s42 = sphi 0, %s39
      %s43 = sphi 0, %s42
      %s59 = sphi 0, %s43
      %s65 = sphi 0, %s67
      %s68 = sphi 0, %s65
      %s69 = sphi 0, %s68
      %s85 = sphi 0, %s69
      %s91 = sphi 0, %s93
      %s94 = sphi 0, %s91
      %s95 = sphi 0, %s94
      %s111 = sphi 0, %s95
      %s119 = sphi 0, %s121
      %s122 = sphi 0, %s119
      %s123 = sphi 0, %s122
      %s139 = sphi 0, %s123
    $region4: #{tpu_custom_call.1} parent=1 // loop_header_branch
      %18 = sbr.rel (%p16) target = $region8
    $region5: #{tpu_custom_call.1} parent=1 // loop_body
      %s20 = ssub.s32 %s15, 1
      %s21 = ssub.s32 %s15, 2
      %s28 = sadd.s32 1, %s23
      %p29 = scmp.ge.s32.totalorder %s28, 3
      %s30 = scalar_select %p29, 0, %s28
      %s31 = sadd.s32 1, %s22
      %s32 = scalar_select %p29, %s31, %s22
      %p33 = scmp.ge.s32.totalorder %s32, 2
      %s34 = scalar_select %p33, 0, %s32
      %s35 = ssub.s32 %s23, %s30
      %s36 = ssub.s32 %s22, %s34
      %s37 = sor.u32 %s35, %s36
      %p38 = scmp.eq.s32.totalorder %s37, 0
      %s40 = sadd.s32 %s39, 1
      %s41 = scalar_select %p38, %s39, %s40
      %p44 = pneg %p38
      %p45 = scmp.eq.s32.totalorder %s15, 5
      %p46 = por %p44, %p45
      %p47 = scmp.ne.s32.totalorder %s39, %s42
      %p48 = scmp.eq.s32.totalorder %s15, 0
      %p49 = por %p47, %p48
      %p50 = scmp.ne.s32.totalorder %s39, %s42
      %p51 = scmp.eq.s32.totalorder %s20, 5
      %p52 = por %p50, %p51
      %p53 = scmp.ne.s32.totalorder %s42, %s43
      %p54 = scmp.eq.s32.totalorder %s20, 0
      %p55 = por %p53, %p54
      %p56 = scmp.ne.s32.totalorder %s42, %s43
      %p57 = scmp.eq.s32.totalorder %s21, 5
      %p58 = por %p56, %p57
      %p60 = scmp.ne.s32.totalorder %s43, %s59
      %p61 = scmp.eq.s32.totalorder %s21, 0
      %p62 = por %p60, %p61
      %s63 = ssub.s32 %s22, %s34
      %p64 = scmp.eq.s32.totalorder %s63, 0
      %s66 = sadd.s32 %s65, 1
      %s67 = scalar_select %p64, %s65, %s66
      %p70 = pneg %p64
      %p71 = scmp.eq.s32.totalorder %s15, 5
      %p72 = por %p70, %p71
      %p73 = scmp.ne.s32.totalorder %s65, %s68
      %p74 = scmp.eq.s32.totalorder %s15, 0
      %p75 = por %p73, %p74
      %p76 = scmp.ne.s32.totalorder %s65, %s68
      %p77 = scmp.eq.s32.totalorder %s20, 5
      %p78 = por %p76, %p77
      %p79 = scmp.ne.s32.totalorder %s68, %s69
      %p80 = scmp.eq.s32.totalorder %s20, 0
      %p81 = por %p79, %p80
      %p82 = scmp.ne.s32.totalorder %s68, %s69
      %p83 = scmp.eq.s32.totalorder %s21, 5
      %p84 = por %p82, %p83
      %p86 = scmp.ne.s32.totalorder %s69, %s85
      %p87 = scmp.eq.s32.totalorder %s21, 0
      %p88 = por %p86, %p87
      %s89 = ssub.s32 %s22, %s34
      %p90 = scmp.eq.s32.totalorder %s89, 0
      %s92 = sadd.s32 %s91, 1
      %s93 = scalar_select %p90, %s91, %s92
      %p96 = pneg %p90
      %p97 = scmp.eq.s32.totalorder %s15, 5
      %p98 = por %p96, %p97
      %p99 = scmp.ne.s32.totalorder %s91, %s94
      %p100 = scmp.eq.s32.totalorder %s15, 0
      %p101 = por %p99, %p100
      %p102 = scmp.ne.s32.totalorder %s91, %s94
      %p103 = scmp.eq.s32.totalorder %s20, 5
      %p104 = por %p102, %p103
      %p105 = scmp.ne.s32.totalorder %s94, %s95
      %p106 = scmp.eq.s32.totalorder %s20, 0
      %p107 = por %p105, %p106
      %p108 = scmp.ne.s32.totalorder %s94, %s95
      %p109 = scmp.eq.s32.totalorder %s21, 5
      %p110 = por %p108, %p109
      %p112 = scmp.ne.s32.totalorder %s95, %s111
      %p113 = scmp.eq.s32.totalorder %s21, 0
      %p114 = por %p112, %p113
      %s115 = ssub.s32 %s23, %s30
      %s116 = ssub.s32 %s22, %s34
      %s117 = sor.u32 %s115, %s116
      %p118 = scmp.eq.s32.totalorder %s117, 0
      %s120 = sadd.s32 %s119, 1
      %s121 = scalar_select %p118, %s119, %s120
      %p124 = pneg %p118
      %p125 = scmp.eq.s32.totalorder %s15, 5
      %p126 = por %p124, %p125
      %p127 = scmp.ne.s32.totalorder %s119, %s122
      %p128 = scmp.eq.s32.totalorder %s15, 0
      %p129 = por %p127, %p128
      %p130 = scmp.ne.s32.totalorder %s119, %s122
      %p131 = scmp.eq.s32.totalorder %s20, 5
      %p132 = por %p130, %p131
      %p133 = scmp.ne.s32.totalorder %s122, %s123
      %p134 = scmp.eq.s32.totalorder %s20, 0
      %p135 = por %p133, %p134
      %p136 = scmp.ne.s32.totalorder %s122, %s123
      %p137 = scmp.eq.s32.totalorder %s21, 5
      %p138 = por %p136, %p137
      %p140 = scmp.ne.s32.totalorder %s123, %s139
      %p141 = scmp.eq.s32.totalorder %s21, 0
      %p142 = por %p140, %p141
      %p143 = scmp.le.s32.totalorder 1, %s15
      %p144 = scmp.lt.s32.totalorder %s15, 7
      %p145 = pnand %p143, %p144
      %p146 = pneg %p145
      // Predicated region
      $region9: #{tpu_custom_call.1} parent=5 // pred_check
        _
      $region10: #{tpu_custom_call.1} parent=5 // pred_check_branch
        %148 = sbr.rel (%p145) target = $region12
      $region11: #{tpu_custom_call.1} parent=5 // pred_region
        %s149 = ssub.s32 %s15, 1
      $region12: #{tpu_custom_call.1} parent=5 // pred_fallthru
        _
      %p150 = scmp.lt.s32.totalorder %s15, 6
      // Predicated region
      $region13: #{tpu_custom_call.1} parent=5 // pred_check
        %p151 = pneg %p150
      $region14: #{tpu_custom_call.1} parent=5 // pred_check_branch
        %153 = sbr.rel (%p151) target = $region16
      $region15: #{tpu_custom_call.1} parent=5 // pred_region
        // Predicated region
        $region17: #{tpu_custom_call.1} parent=15 // pred_check
          %p154 = pneg %p49
        $region18: #{tpu_custom_call.1} parent=15 // pred_check_branch
          %156 = sbr.rel (%p154) target = $region20
        $region19: #{tpu_custom_call.1} parent=15 // pred_region
          %s157 = sand.u32 %s39, 1
          %s158 = scalar_lea.sflag [#allocation3], %s157
          %s159 = sand.u32 %s39, 1
          %s160 = smul.addr %s159, 4
          %s161 = scalar_lea.vmem [#allocation2], %s160
          %s163 = ssub.s32 64, 64
          %164 = vsyncadd %s158, %s163
          %s165 = smul.addr %s23, 2
          %s166 = sadd.s32 %s22, %s165
          %s167 = smul.addr %s166, 64
          %s168 = scalar_lea.hbm %s0, %s167
          %s170 = sshll.u32 %s161, 4
          %s171 = int_to_ptr.vmem [resolvable:$true] %s170
          %173 = dma.hbm_to_vmem [thread:$0]  %s168, 64, %s171, %s158
        $region20: #{tpu_custom_call.1} parent=15 // pred_fallthru
          _
        // Predicated region
        $region21: #{tpu_custom_call.1} parent=15 // pred_check
          %p174 = pneg %p75
        $region22: #{tpu_custom_call.1} parent=15 // pred_check_branch
          %176 = sbr.rel (%p174) target = $region24
        $region23: #{tpu_custom_call.1} parent=15 // pred_region
          %p177 = scmp.lt.s32.totalorder %s22, 1
          %s178 = scalar_select %p177, %s22, 1
          %s179 = smul.addr %s178, 8
          %s180 = scalar_lea.vmem %s1, %s179
        $region24: #{tpu_custom_call.1} parent=15 // pred_fallthru
          _
        // Predicated region
        $region25: #{tpu_custom_call.1} parent=15 // pred_check
          %p181 = pneg %p101
        $region26: #{tpu_custom_call.1} parent=15 // pred_check_branch
          %183 = sbr.rel (%p181) target = $region28
        $region27: #{tpu_custom_call.1} parent=15 // pred_region
          %p184 = scmp.lt.s32.totalorder %s22, 1
          %s185 = scalar_select %p184, %s22, 1
          %s186 = smul.addr %s185, 8
          %s187 = scalar_lea.vmem %s2, %s186
        $region28: #{tpu_custom_call.1} parent=15 // pred_fallthru
          _
      $region16: #{tpu_custom_call.1} parent=5 // pred_fallthru
        _
      %p188 = scmp.le.s32.totalorder 1, %s15
      %p189 = scmp.lt.s32.totalorder %s15, 7
      %p190 = pnand %p188, %p189
      %p191 = pneg %p190
      // Predicated region
      $region29: #{tpu_custom_call.1} parent=5 // pred_check
        _
      $region30: #{tpu_custom_call.1} parent=5 // pred_check_branch
        %193 = sbr.rel (%p190) target = $region32
      $region31: #{tpu_custom_call.1} parent=5 // pred_region
        %s194 = ssub.s32 %s15, 1
        %s195 = sand.u32 %s42, 1
        %s196 = scalar_lea.sflag [#allocation3], %s195
        %s197 = sand.u32 %s42, 1
        %s198 = smul.addr %s197, 4
        %s199 = scalar_lea.vmem [#allocation2], %s198
        // Predicated region
        $region33: #{tpu_custom_call.1} parent=31 // pred_check
          %p200 = pneg %p55
        $region34: #{tpu_custom_call.1} parent=31 // pred_check_branch
          %202 = sbr.rel (%p200) target = $region36
        $region35: #{tpu_custom_call.1} parent=31 // pred_region
          %203 = dma.done %s196, 64
        $region36: #{tpu_custom_call.1} parent=31 // pred_fallthru
          _
        %s204 = sand.u32 %s42, 1
        %s205 = scalar_lea.sflag [#allocation3], %s204
        %s206 = sand.u32 %s42, 1
        %s207 = smul.addr %s206, 4
        %s208 = scalar_lea.vmem [#allocation2], %s207
        %p209 = pneg %p55
        %p210 = pneg %p52
        %p211 = scmp.lt.s32.totalorder %s24, 1
        %s212 = scalar_select %p211, %s24, 1
        %s213 = smul.addr %s212, 8
        %s214 = scalar_lea.vmem %s1, %s213
        %p215 = pneg %p81
        %p216 = pneg %p78
        %p217 = scmp.lt.s32.totalorder %s24, 1
        %s218 = scalar_select %p217, %s24, 1
        %s219 = smul.addr %s218, 8
        %s220 = scalar_lea.vmem %s2, %s219
        %p221 = pneg %p107
        %p222 = pneg %p104
        %p223 = pneg %p135
        %p224 = pneg %p132
        %s225 = sand.u32 %s122, 1
        %s226 = scalar_lea.sflag [#allocation4], %s225
        %s227 = sand.u32 %s122, 1
        %s228 = smul.addr %s227, 8
        %s229 = scalar_lea.vmem [#allocation5], %s228
        %p230 = scmp.lt.s32.totalorder %s24, 1
        %s231 = scalar_select %p230, %s24, 1
        %s232 = smul.addr %s231, 8
        %s233 = scalar_lea.vmem %s1, %s232
        %p234 = scmp.lt.s32.totalorder %s24, 1
        %s235 = scalar_select %p234, %s24, 1
        %s236 = smul.addr %s235, 8
        %s237 = scalar_lea.vmem %s2, %s236
        %v239 = vld [vmem:[%s199] sm:$0xf]
        %v240 = vld [vmem:[%s233] sm:$0xff]
        %v241 = vld [vmem:[%s237] sm:$0xff]
        %v242 = vlaneseq
        %v243 = vand.u32 %v242, 127
        %v244 = vlaneseq
        %v245 = vshrl.u32 %v244, 7
        %v246 = vsub.s32 0, %v245
        %v247 = vrot.slane %v241, %v246
        %249 = vbcast.lane.b32.xlu0 %v247, 256
        %v250 = vpop.permute.xlu0 %249
        %vm251 = vcmp.eq.s32.totalorder %v250, %v243
        %v252 = vsel %vm251, 1, 0
        %v253 = vcvt.s32.f32 %v252
        %v254 = vpack.c.bf16 %v253, %v253
        %vm255 = vcmask 64512
        %v257 = vsel %vm255, %v254, 0
        %vm259 = vcmask 1043456
        %v261 = vsel %vm259, %v239, 0
        %263 = vmatprep.subr.bf16.mxu0 0
        %264 = vmatpush1.bf16.msra.mxu0 %v261
        %265 = vmatprep.subr.bf16.mxu0 0
        %266 = vmatpush1.bf16.msra.mxu0 0
        %267 = vmatprep.subr.bf16.mxu0 0
        %268 = vmatpush1.bf16.msra.mxu0 0
        %269 = vmatprep.subr.bf16.mxu0 0
        %270 = vmatpush1.bf16.msra.mxu0 0
        %271 = vmatprep.subr.bf16.mxu0 0
        %272 = vmatpush1.bf16.msra.mxu0 0
        %273 = vmatprep.subr.bf16.mxu0 0
        %274 = vmatpush1.bf16.msra.mxu0 0
        %275 = vmatprep.subr.bf16.mxu0 0
        %276 = vmatpush1.bf16.msra.mxu0 0
        %277 = vmatprep.subr.bf16.mxu0 0
        %278 = vmatpush1.bf16.msra.mxu0 0
        %279 = vmatprep.subr.bf16.mxu0 0
        %280 = vmatpush1.bf16.msra.mxu0 0
        %281 = vmatprep.subr.bf16.mxu0 0
        %282 = vmatpush1.bf16.msra.mxu0 0
        %283 = vmatprep.subr.bf16.mxu0 0
        %284 = vmatpush1.bf16.msra.mxu0 0
        %285 = vmatprep.subr.bf16.mxu0 0
        %286 = vmatpush1.bf16.msra.mxu0 0
        %287 = vmatprep.subr.bf16.mxu0 0
        %288 = vmatpush1.bf16.msra.mxu0 0
        %289 = vmatprep.subr.bf16.mxu0 0
        %290 = vmatpush1.bf16.msra.mxu0 0
        %291 = vmatprep.subr.bf16.mxu0 0
        %292 = vmatpush1.bf16.msra.mxu0 0
        %293 = vmatprep.subr.bf16.mxu0 0
        %294 = vmatpush1.bf16.msra.mxu0 0
        %295 = vmatprep.mubr.bf16.mxu0 0
        %296 = vmatmul.mubr.bf16.gmra.mrb[0].mxu0 %v257
        %v297 = vpop.f32.mrb[0].mxu0
        %v298 = vadd.f32 0.0, %v297
        %v299 = vpop.f32.mrb[0].mxu0
        %v300 = vpop.f32.mrb[0].mxu0
        %v301 = vpop.f32.mrb[0].mxu0
        %302 = vdwg.mxu0
        %304 = vrot.lane.b32.xlu0 %v240, 8
        %v305 = vpop.permute.xlu0 %304
        %v307 = vsub.f32 %v298, %v305
        %v308 = vsel %vm255, %v298, -inf
        %309 = vmax.xlane.f32.xlu0 %v308
        %v310 = vpop.xlane.xlu0 %309
        %v311 = vsub.f32 %v298, %v310
        %v312 = vmul.f32 %v311, 1.442695
        %v313 = vpow.pop %v312
        %v314 = vsel %vm255, %v313, 0.0
        %315 = vadd.xlane.f32.xlu0 %v314
        %v316 = vpop.xlane.xlu0 %315
        %v317 = vlog2.pop %v316
        %v318 = vmul.f32 %v317, 0.6931472
        %v319 = vadd.f32 %v318, %v310
        %v320 = vlaneseq
        %v321 = vshrl.u32 %v320, 7
        %v322 = vsub.s32 1, %v321
        %v323 = vrot.slane %v241, %v322
        %325 = vbcast.lane.b32.xlu0 %v323, 256
        %v326 = vpop.permute.xlu0 %325
        %vm327 = vcmp.eq.s32.totalorder %v326, %v243
        %v328 = vsel %vm327, %v298, 0.0
        %v329 = vsel %vm255, %v328, 0.0
        %330 = vadd.xlane.f32.xlu0 %v329
        %v331 = vpop.xlane.xlu0 %330
        %v332 = vsub.f32 %v319, %v331
        %vm333 = vcmask 7168
        %v334 = vsel %vm333, %v332, 0.0
        %335 = vadd.xlane.f32.xlu0 %v334
        %v336 = vpop.xlane.xlu0 %335
        %v337 = vrot.slane %v336, 4
        %v338 = vadd.f32 %v336, %v337
        %v339 = vrot.slane %v338, 2
        %v340 = vadd.f32 %v338, %v339
        %v341 = vrot.slane %v340, 1
        %v342 = vadd.f32 %v340, %v341
        %s343 = vtos %v342
        %s344 = smul.f32 %s343, 0.0625
        %v345 = vand.u32 2147483647, %v307
        %347 = vrot.lane.b32.xlu0 %v345, 120
        %v348 = vpop.permute.xlu0 %347
        %vm350 = vcmask 15360
        %v351 = vsel %vm350, %v348, 0.0
        %352 = vadd.xlane.f32.xlu0 %v351
        %v353 = vpop.xlane.xlu0 %352
        %v354 = vrot.slane %v353, 4
        %v355 = vadd.f32 %v353, %v354
        %v356 = vrot.slane %v355, 2
        %v357 = vadd.f32 %v355, %v356
        %v358 = vrot.slane %v357, 1
        %v359 = vadd.f32 %v357, %v358
        %s360 = vtos %v359
        %s361 = smul.f32 %s360, 0.0625
        %vm362 = vcmp.eq.s32.totalorder %v243, 0
        %vm363 = vcmp.eq.s32.totalorder %v243, 1
        %v364 = vstv %s361
        %v365 = vsel %vm363, %v364, 0.0
        %v366 = vstv %s344
        %v367 = vsel %vm362, %v366, %v365
        %368 = vst [vmem:[%s229] sm:$0xff] %v367
        %s369 = sand.u32 %s122, 1
        %s370 = scalar_lea.sflag [#allocation4], %s369
        %s371 = sand.u32 %s122, 1
        %s372 = smul.addr %s371, 8
        %s373 = scalar_lea.vmem [#allocation5], %s372
        // Predicated region
        $region37: #{tpu_custom_call.1} parent=31 // pred_check
          %p374 = pneg %p132
        $region38: #{tpu_custom_call.1} parent=31 // pred_check_branch
          %376 = sbr.rel (%p374) target = $region40
        $region39: #{tpu_custom_call.1} parent=31 // pred_region
          %s378 = ssub.s32 128, 128
          %379 = vsyncadd %s370, %s378
          %s380 = smul.addr %s25, 2
          %s381 = sadd.s32 %s24, %s380
          %s382 = smul.addr %s381, 128
          %s383 = scalar_lea.hbm %s3, %s382
          %s385 = sshll.u32 %s373, 4
          %s386 = int_to_ptr.vmem [resolvable:$true] %s385
          %388 = dma.vmem_to_hbm [thread:$0]  %s386, 128, %s383, %s370
        $region40: #{tpu_custom_call.1} parent=31 // pred_fallthru
          _
      $region32: #{tpu_custom_call.1} parent=5 // pred_fallthru
        _
      %p389 = scmp.le.s32.totalorder 2, %s15
      // Predicated region
      $region41: #{tpu_custom_call.1} parent=5 // pred_check
        %p390 = pneg %p389
      $region42: #{tpu_custom_call.1} parent=5 // pred_check_branch
        %392 = sbr.rel (%p390) target = $region44
      $region43: #{tpu_custom_call.1} parent=5 // pred_region
        %s393 = ssub.s32 %s15, 2
        // Predicated region
        $region45: #{tpu_custom_call.1} parent=43 // pred_check
          %p394 = pneg %p138
        $region46: #{tpu_custom_call.1} parent=43 // pred_check_branch
          %396 = sbr.rel (%p394) target = $region48
        $region47: #{tpu_custom_call.1} parent=43 // pred_region
          %s397 = sand.u32 %s123, 1
          %s398 = scalar_lea.sflag [#allocation4], %s397
          %s399 = sand.u32 %s123, 1
          %s400 = smul.addr %s399, 8
          %s401 = scalar_lea.vmem [#allocation5], %s400
          %402 = dma.done %s398, 128
        $region48: #{tpu_custom_call.1} parent=43 // pred_fallthru
          _
      $region44: #{tpu_custom_call.1} parent=5 // pred_fallthru
        _
    $region6: #{tpu_custom_call.1} parent=1 // loop_footer
      %s19 = sadd.s32 1, %s15
    $region7: #{tpu_custom_call.1} parent=1 // loop_footer_branch
      %14 = sbr.rel target = $region3
    $region8: #{tpu_custom_call.1} parent=1 // loop_exit
      _
    %403 = vsyncpa [#allocation3], 1
    %s404 = scalar_lea.sflag [#allocation3], 1
    %405 = vsyncpa %s404, 1
    %406 = vsyncpa [#allocation4], 1
    %s407 = scalar_lea.sflag [#allocation4], 1
    %408 = vsyncpa %s407, 1

</llo_original>
